<compile_context>
chip_gen: v5e
topology: v5e:2x2
jax: 0.10.0
libtpu: 0.0.40
codegen_flags: <defaults>
</compile_context>

<pallas_src>
import functools

import jax
import jax.numpy as jnp
from jax.experimental import pallas as pl
from jax.experimental.pallas import tpu as pltpu


def _gaussian_prior_kernel(loc_ref, logscale_ref, loc_out_ref, scale_out_ref,
                           *, min_scale):
    # loc_ref / logscale_ref: (1, Dp) resident params.
    # loc_out_ref / scale_out_ref: (TB, Dp) batch tile of the outputs.
    tb, dp = loc_out_ref.shape
    loc = loc_ref[...]                                   # (1, Dp)
    scale = jnp.exp(logscale_ref[...]) + min_scale       # (1, Dp) — EUP exp, tiny
    loc_out_ref[...] = jnp.broadcast_to(loc, (tb, dp)).astype(loc_out_ref.dtype)
    scale_out_ref[...] = jnp.broadcast_to(scale, (tb, dp)).astype(scale_out_ref.dtype)


def gaussian_prior_layer(input_or_batch, loc, logscale, *, min_scale=1e-10,
                         batch_tile=None):
    """Pallas implementation of GaussianPriorLayer.forward.

    Args:
      input_or_batch: array whose leading dim is the batch size, or an int b.
      loc:            (1, output_dim) float32 parameter.
      logscale:       (1, output_dim) float32 parameter.
    Returns:
      (loc_b, scale_b): both (b, output_dim) float32 — the parameters of the
      diagonal Gaussian (DiagGaussianDist(loc=loc_b, scale=scale_b)).
    """
    if hasattr(input_or_batch, "shape"):
        b = int(input_or_batch.shape[0])
    else:
        b = int(input_or_batch)
    d = int(loc.shape[-1])

    loc2 = jnp.asarray(loc, jnp.float32).reshape(1, d)
    ls2 = jnp.asarray(logscale, jnp.float32).reshape(1, d)

    # Lane-dense output: pad D up to a multiple of 128, slice the result after.
    # (Padded columns hold loc=0, scale=1+min_scale and are discarded.)
    dp = max(128, ((d + 127) // 128) * 128)
    if dp != d:
        pad = dp - d
        loc2 = jnp.pad(loc2, ((0, 0), (0, pad)))
        ls2 = jnp.pad(ls2, ((0, 0), (0, pad)))

    # Batch tile: largest multiple-of-8 tile keeping double-buffered outputs
    # (2 outputs x 2 buffers x TB x Dp x 4B) under ~8 MiB — safe on all scoped
    # VMEM defaults (v5e 16 MiB, v6e/v7x 32 MiB, v7x 64 MiB physical).
    if batch_tile is None:
        max_tb = max(8, (8 << 20) // (4 * dp * 4))
        tb = min(b, max_tb, 1024)
    else:
        tb = min(b, int(batch_tile))
    if tb != b:
        tb = max(8, (tb // 8) * 8)

    kernel = functools.partial(_gaussian_prior_kernel, min_scale=float(min_scale))

    loc_out, scale_out = pl.pallas_call(
        kernel,
        out_shape=(jax.ShapeDtypeStruct((b, dp), jnp.float32),
                   jax.ShapeDtypeStruct((b, dp), jnp.float32)),
        grid=(pl.cdiv(b, tb),),
        in_specs=[
            # Parameters: constant block index -> DMA'd once, resident in VMEM.
            pl.BlockSpec((1, dp), lambda i: (0, 0)),
            pl.BlockSpec((1, dp), lambda i: (0, 0)),
        ],
        out_specs=(
            pl.BlockSpec((tb, dp), lambda i: (i, 0)),
            pl.BlockSpec((tb, dp), lambda i: (i, 0)),
        ),
        compiler_params=pltpu.CompilerParams(
            dimension_semantics=("parallel",)),
    )(loc2, ls2)

    if dp != d:
        loc_out = loc_out[:, :d]
        scale_out = scale_out[:, :d]
    return loc_out, scale_out


def _reference(b, loc, logscale, min_scale):
    d = loc.shape[-1]
    ref_loc = jnp.broadcast_to(loc.reshape(1, d), (b, d))
    ref_scale = jnp.broadcast_to(jnp.exp(logscale.reshape(1, d)), (b, d)) + min_scale
    return ref_loc, ref_scale


if __name__ == "__main__":
    key = jax.random.PRNGKey(0)
    batch, output_dim = 8, 32
    min_scale = 1e-10

    k_in, k_loc, k_ls = jax.random.split(key, 3)
    # `input` only supplies the batch size in the original module.
    x = jax.random.normal(k_in, (batch, output_dim), dtype=jnp.float32)

    # PyTorch init (active=True): loc ~ N(0,1), logscale ~ N(0,1) * 0.001
    loc = jax.random.normal(k_loc, (1, output_dim), dtype=jnp.float32)
    logscale = jax.random.normal(k_ls, (1, output_dim), dtype=jnp.float32) * 0.001

    loc_out, scale_out = gaussian_prior_layer(x, loc, logscale, min_scale=min_scale)
    loc_out = jax.block_until_ready(loc_out)
    scale_out = jax.block_until_ready(scale_out)

    ref_loc, ref_scale = _reference(batch, loc, logscale, min_scale)

    assert loc_out.shape == (batch, output_dim)
    assert scale_out.shape == (batch, output_dim)
    assert jnp.allclose(loc_out, ref_loc, atol=1e-6, rtol=1e-6), "loc mismatch"
    assert jnp.allclose(scale_out, ref_scale, atol=1e-6, rtol=1e-6), "scale mismatch"
    # TODO(synk): DiagGaussianDist.log_prob / plot / sampling are distribution
    # methods, not part of the forward hot path, so they are not ported here;
    # the kernel returns the (loc, scale) parameters that define the distribution.
    print("KERNEL_OK")
</pallas_src>

<mosaic_0001>
module attributes {stable_mosaic.version = 11 : i64} {
  func.func @_gaussian_prior_kernel(%arg0: i32, %arg1: memref<1x128xf32, #tpu.memory_space<vmem>>, %arg2: memref<1x128xf32, #tpu.memory_space<vmem>>, %arg3: memref<8x128xf32, #tpu.memory_space<vmem>>, %arg4: memref<8x128xf32, #tpu.memory_space<vmem>>) attributes {dimension_semantics = [#tpu.dimension_semantics<parallel>], iteration_bounds = array<i64: 1>, scalar_prefetch = 0 : i64, scratch_operands = 0 : i64, tpu.core_type = #tpu.core_type<tc>, window_params = [{pipeline_mode = #tpu.pipeline_mode<synchronous>, transform_indices = @transform_0, window_bounds = array<i64: 1, 128>}, {pipeline_mode = #tpu.pipeline_mode<synchronous>, transform_indices = @transform_1, window_bounds = array<i64: 1, 128>}, {transform_indices = @transform_2, window_bounds = array<i64: 8, 128>}, {transform_indices = @transform_3, window_bounds = array<i64: 8, 128>}]} {
    %c0 = arith.constant 0 : index
    %c0_0 = arith.constant 0 : index
    %0 = vector.load %arg1[%c0, %c0_0] : memref<1x128xf32, #tpu.memory_space<vmem>>, vector<1x128xf32>
    %c0_1 = arith.constant 0 : index
    %c0_2 = arith.constant 0 : index
    %1 = vector.load %arg2[%c0_1, %c0_2] : memref<1x128xf32, #tpu.memory_space<vmem>>, vector<1x128xf32>
    %2 = math.exp %1 : vector<1x128xf32>
    %cst = arith.constant 1.000000e-10 : f32
    %3 = vector.broadcast %cst : f32 to vector<1x128xf32>
    %4 = arith.addf %2, %3 : vector<1x128xf32>
    %5 = vector.shape_cast %0 : vector<1x128xf32> to vector<1x128xf32>
    %6 = vector.broadcast %5 : vector<1x128xf32> to vector<8x128xf32>
    %c0_3 = arith.constant 0 : index
    %c0_4 = arith.constant 0 : index
    %7 = vector.load %arg3[%c0_3, %c0_4] : memref<8x128xf32, #tpu.memory_space<vmem>>, vector<8x128xf32>
    tpu.vector_store %arg3[%c0_3, %c0_4], %6 {strides = array<i32>} : memref<8x128xf32, #tpu.memory_space<vmem>>, vector<8x128xf32>,
    %8 = vector.shape_cast %4 : vector<1x128xf32> to vector<1x128xf32>
    %9 = vector.broadcast %8 : vector<1x128xf32> to vector<8x128xf32>
    %c0_5 = arith.constant 0 : index
    %c0_6 = arith.constant 0 : index
    %10 = vector.load %arg4[%c0_5, %c0_6] : memref<8x128xf32, #tpu.memory_space<vmem>>, vector<8x128xf32>
    tpu.vector_store %arg4[%c0_5, %c0_6], %9 {strides = array<i32>} : memref<8x128xf32, #tpu.memory_space<vmem>>, vector<8x128xf32>,
    return
  }
  func.func @transform_0(%arg0: i32) -> (i32, i32) {
    %c0_i32 = arith.constant 0 : i32
    %c0_i32_0 = arith.constant 0 : i32
    %c0_i32_1 = arith.constant 0 : i32
    return %c0_i32, %c0_i32_0 : i32, i32
  }
  func.func @transform_1(%arg0: i32) -> (i32, i32) {
    %c0_i32 = arith.constant 0 : i32
    %c0_i32_0 = arith.constant 0 : i32
    %c0_i32_1 = arith.constant 0 : i32
    return %c0_i32, %c0_i32_0 : i32, i32
  }
  func.func @transform_2(%arg0: i32) -> (i32, i32) {
    %c0_i32 = arith.constant 0 : i32
    %c0_i32_0 = arith.constant 0 : i32
    return %arg0, %c0_i32 : i32, i32
  }
  func.func @transform_3(%arg0: i32) -> (i32, i32) {
    %c0_i32 = arith.constant 0 : i32
    %c0_i32_0 = arith.constant 0 : i32
    return %arg0, %c0_i32 : i32, i32
  }
}

</mosaic_0001>

<llo_original>
// kernel: tpu_custom_call.1
$region0: #{tpu_custom_call.1}
  #allocation0 [shape = 'u32[]', space=smem, size = 0x4, offset = 0x4, fixed_abs, tag = 'smem constant byte address 0x4 - core index']
  #allocation1 [shape = 'u32[72,128]{1,0:T(1,128)}', space=vmem, size = 0x9000, scoped, tag = 'internal scratch']
  %s0 = inlined_call_operand.hbm [shape: f32[1,128], index: 0, kind: input, shape index: {}]
  %s1 = inlined_call_operand.hbm [shape: f32[1,128], index: 1, kind: input, shape index: {}]
  %s2 = inlined_call_operand.hbm [shape: f32[8,128], index: 2, kind: output, shape index: {0}]
  %s3 = inlined_call_operand.hbm [shape: f32[8,128], index: 3, kind: output, shape index: {1}]
  %4 = xla_tuple %s2, %s3
  %s5 = sld [smem:[#allocation0]]
  $region34: #{tpu_custom_call.1} parent=0
    _
  %s7 = ssub.s32 1, %s5
  %s8 = scalar_select 0, %s7, %s5
  $region1: #{tpu_custom_call.1} parent=0
    #allocation2 [shape = 'u8[512]{0}', space=vmem, size = 0x400, scoped, tag = 'input window, operand 0, single buffered']
    #allocation3 [shape = 's32[1]{0}', space=sflag, size = 0x4, scoped, tag = 'scoped memory for tpu_custom_call.1']
    #allocation4 [shape = 's32[1]{0}', space=sflag, size = 0x4, scoped, tag = 'scoped memory for tpu_custom_call.1']
    #allocation5 [shape = 'u8[512]{0}', space=vmem, size = 0x400, scoped, tag = 'input window, operand 1, single buffered']
    #allocation6 [shape = 's32[1]{0}', space=sflag, size = 0x4, scoped, tag = 'scoped memory for tpu_custom_call.1']
    #allocation7 [shape = 'u8[4096]{0}', space=vmem, size = 0x1000, scoped, tag = 'output window, operand 0, single buffered']
    #allocation8 [shape = 'u8[4096]{0}', space=vmem, size = 0x1000, scoped, tag = 'output window, operand 1, single buffered']
    #allocation9 [shape = 's32[1]{0}', space=sflag, size = 0x4, scoped, tag = 'scoped memory for tpu_custom_call.1']
    %9 = vsyncpa [#allocation3], 0
    %10 = vsyncpa [#allocation6], 0
    %11 = vsyncpa [#allocation4], 0
    %12 = vsyncpa [#allocation9], 0
    // Predicated region
    $region2: #{tpu_custom_call.1} parent=1 // pred_check
      _
    $region3: #{tpu_custom_call.1} parent=1 // pred_check_branch
      %14 = sbr.rel (0) target = $region5
    $region4: #{tpu_custom_call.1} parent=1 // pred_region
      %16 = vsyncadd [#allocation3], 0
      %s18 = sshll.u32 %s0, 4
      %s19 = int_to_ptr.hbm [resolvable:$true] %s18
      %s20 = sshll.u32 [#allocation2], 4
      %s21 = int_to_ptr.vmem [resolvable:$true] %s20
      %23 = dma.hbm_to_vmem [thread:$0]  %s19, 16, %s21, [#allocation3]
    $region5: #{tpu_custom_call.1} parent=1 // pred_fallthru
      _
    // Predicated region
    $region6: #{tpu_custom_call.1} parent=1 // pred_check
      _
    $region7: #{tpu_custom_call.1} parent=1 // pred_check_branch
      %25 = sbr.rel (0) target = $region9
    $region8: #{tpu_custom_call.1} parent=1 // pred_region
      %27 = vsyncadd [#allocation6], 0
      %s29 = sshll.u32 %s1, 4
      %s30 = int_to_ptr.hbm [resolvable:$true] %s29
      %s31 = sshll.u32 [#allocation5], 4
      %s32 = int_to_ptr.vmem [resolvable:$true] %s31
      %34 = dma.hbm_to_vmem [thread:$0]  %s30, 16, %s32, [#allocation6]
    $region9: #{tpu_custom_call.1} parent=1 // pred_fallthru
      _
    // Predicated region
    $region10: #{tpu_custom_call.1} parent=1 // pred_check
      _
    $region11: #{tpu_custom_call.1} parent=1 // pred_check_branch
      %36 = sbr.rel (0) target = $region13
    $region12: #{tpu_custom_call.1} parent=1 // pred_region
      %38 = dma.done [#allocation3], 16
    $region13: #{tpu_custom_call.1} parent=1 // pred_fallthru
      _
    // Predicated region
    $region14: #{tpu_custom_call.1} parent=1 // pred_check
      _
    $region15: #{tpu_custom_call.1} parent=1 // pred_check_branch
      %40 = sbr.rel (0) target = $region17
    $region16: #{tpu_custom_call.1} parent=1 // pred_region
      %42 = dma.done [#allocation6], 16
    $region17: #{tpu_custom_call.1} parent=1 // pred_fallthru
      _
    %v43 = vld [vmem:[#allocation2] sm:$0x1]
    %v44 = vld [vmem:[#allocation5] sm:$0x1]
    %v45 = vmul.f32 %v44, 1.442695
    %v46 = vpow.pop %v45
    %v47 = vadd.f32 %v46, 1e-10
    %v49 = vperm.slane %v43, 0
    %51 = vst [vmem:[#allocation7] sm:$0xff] %v49
    %v53 = vperm.slane %v47, 0
    %55 = vst [vmem:[#allocation8] sm:$0xff] %v53
    // Predicated region
    $region18: #{tpu_custom_call.1} parent=1 // pred_check
      _
    $region19: #{tpu_custom_call.1} parent=1 // pred_check_branch
      %57 = sbr.rel (0) target = $region21
    $region20: #{tpu_custom_call.1} parent=1 // pred_region
      %59 = vsyncadd [#allocation4], 0
      %s61 = sshll.u32 [#allocation7], 4
      %s62 = int_to_ptr.vmem [resolvable:$true] %s61
      %s63 = sshll.u32 %s2, 4
      %s64 = int_to_ptr.hbm [resolvable:$true] %s63
      %66 = dma.vmem_to_hbm [thread:$0]  %s62, 128, %s64, [#allocation4]
    $region21: #{tpu_custom_call.1} parent=1 // pred_fallthru
      _
    // Predicated region
    $region22: #{tpu_custom_call.1} parent=1 // pred_check
      _
    $region23: #{tpu_custom_call.1} parent=1 // pred_check_branch
      %68 = sbr.rel (0) target = $region25
    $region24: #{tpu_custom_call.1} parent=1 // pred_region
      %70 = vsyncadd [#allocation9], 0
      %s72 = sshll.u32 [#allocation8], 4
      %s73 = int_to_ptr.vmem [resolvable:$true] %s72
      %s74 = sshll.u32 %s3, 4
      %s75 = int_to_ptr.hbm [resolvable:$true] %s74
      %77 = dma.vmem_to_hbm [thread:$0]  %s73, 128, %s75, [#allocation9]
    $region25: #{tpu_custom_call.1} parent=1 // pred_fallthru
      _
    // Predicated region
    $region26: #{tpu_custom_call.1} parent=1 // pred_check
      _
    $region27: #{tpu_custom_call.1} parent=1 // pred_check_branch
      %79 = sbr.rel (0) target = $region29
    $region28: #{tpu_custom_call.1} parent=1 // pred_region
      %81 = dma.done [#allocation4], 128
    $region29: #{tpu_custom_call.1} parent=1 // pred_fallthru
      _
    // Predicated region
    $region30: #{tpu_custom_call.1} parent=1 // pred_check
      _
    $region31: #{tpu_custom_call.1} parent=1 // pred_check_branch
      %83 = sbr.rel (0) target = $region33
    $region32: #{tpu_custom_call.1} parent=1 // pred_region
      %85 = dma.done [#allocation9], 128
    $region33: #{tpu_custom_call.1} parent=1 // pred_fallthru
      _
    %86 = vsyncpa [#allocation3], 1
    %87 = vsyncpa [#allocation6], 1
    %88 = vsyncpa [#allocation4], 1
    %89 = vsyncpa [#allocation9], 1

</llo_original>
